<compile_context>
chip_gen: v5e
topology: v5e:2x2
jax: 0.10.0
libtpu: 0.0.40
codegen_flags: <defaults>
</compile_context>

<pallas_src>
import math

import jax
import jax.numpy as jnp
from jax.experimental import pallas as pl
from jax.experimental.pallas import tpu as pltpu


def _round_up(x: int, m: int) -> int:
    return ((x + m - 1) // m) * m


def _vmem_capacity_bytes() -> int:
    try:
        return int(pltpu.get_tpu_info().vmem_capacity_bytes)
    except Exception:
        return 64 * 1024 * 1024  # conservative fallback (v7x-sized VMEM)


def _default_tile_rows(vmem_cap: int) -> int:
    # Per packed row the pipelined working set is ~6 * 512 B:
    #   2 inputs  x 2 buffers x 512 B  (lane width padded to 128)
    # + 2 output buffers      x 512 B  (pack lanes padded to 128)
    # Keep the working set well inside VMEM (<=2/5 of capacity, capped 48 MiB):
    # v5e/v6e (128 MiB) -> 16384 rows, v7x (64 MiB) -> ~8944 rows.
    budget = min((vmem_cap * 2) // 5, 48 * 1024 * 1024)
    tr = budget // (6 * 512)
    return max(4096, min(16384, (tr // 8) * 8))


def _semantic_decoder_kernel(x1_ref, x2_ref, w_ref, b_ref, o_ref):
    # x1_ref, x2_ref: (tile_rows, lane)   VMEM
    # w_ref:          (2, lane, pack)     VMEM block-diagonal weight halves
    # b_ref:          (1, 1)              SMEM scalar bias
    # o_ref:          (tile_rows, pack)   VMEM
    acc = jnp.dot(x1_ref[...], w_ref[0], preferred_element_type=jnp.float32)
    acc = acc + jnp.dot(x2_ref[...], w_ref[1], preferred_element_type=jnp.float32)
    o_ref[...] = (acc + b_ref[0, 0]).astype(o_ref.dtype)


def semantic_decoder(x1, x2, weight, bias, *, tile_rows=None):
    """Pallas implementation of SemanticDecoder.forward.

    x1, x2 : (..., H) float32
    weight : (1, 2H)  float32   (nn.Linear(2H, 1).weight layout)
    bias   : (1,)     float32
    returns: (..., 1) float32
    """
    assert x1.shape == x2.shape
    h = x1.shape[-1]
    assert weight.shape == (1, 2 * h)

    lead_shape = x1.shape[:-1]
    n = math.prod(lead_shape)  # math.prod(()) == 1

    # Lane packing: largest pack dividing both 128 // H and N -> the packing
    # reshape is free (no pad, no copy, no extra HBM traffic).
    if h <= 128 and 128 % h == 0:
        pack = math.gcd(128 // h, n)
    else:
        pack = 1  # TODO(synk): H > 128 (or H not dividing 128) uses the unpacked path.
    lane = h * pack
    nr = n // pack  # exact by construction of `pack`

    # Weight halves acting on x1 / x2, block-diagonal (lane, pack), stacked
    # into one constant (2, lane, pack) input block.
    w1 = weight[0, :h]
    w2 = weight[0, h:]
    if pack > 1:
        eye = jnp.eye(pack, dtype=weight.dtype)
        w1m = (eye[:, None, :] * w1[None, :, None]).reshape(lane, pack)
        w2m = (eye[:, None, :] * w2[None, :, None]).reshape(lane, pack)
    else:
        w1m = w1.reshape(lane, 1)
        w2m = w2.reshape(lane, 1)
    wm = jnp.stack([w1m, w2m], axis=0)          # (2, lane, pack)
    b = bias.reshape(1, 1)

    x1r = x1.reshape(nr, lane)                  # free contiguous reshapes
    x2r = x2.reshape(nr, lane)

    # Only truly tiny inputs are padded (to one 8-sublane tile, a few KiB);
    # everything else relies on boundary clipping for the ragged last tile.
    nr_pad = nr
    if nr < 8:
        nr_pad = 8
        x1r = jnp.pad(x1r, ((0, nr_pad - nr), (0, 0)))
        x2r = jnp.pad(x2r, ((0, nr_pad - nr), (0, 0)))

    vmem_cap = _vmem_capacity_bytes()
    if tile_rows is None:
        tile_rows = _default_tile_rows(vmem_cap)

    # Balanced tile sizing.  Keep >= 2 grid steps whenever possible (v7x has 2
    # TensorCores) and keep the block no larger than the array so the only
    # partial block is the clipped ragged tail.
    min_steps = 2 if nr_pad > 8 else 1
    steps = max(pl.cdiv(nr_pad, tile_rows), min_steps)
    tr = _round_up(pl.cdiv(nr_pad, steps), 8)
    tr = max(8, min(tr, (nr_pad // 8) * 8))
    steps = pl.cdiv(nr_pad, tr)

    # Scoped-VMEM limit from the actual double-buffered working set, including
    # the lane-padded (tr, pack)->(tr, 128) output buffers and the weights.
    work_set = tr * 512 * 6 + 2 * 2 * 128 * 128 * 4
    vmem_limit = max(32 * 1024 * 1024, work_set + (8 << 20))
    vmem_limit = int(min(vmem_limit, max(vmem_cap - (8 << 20), 32 * 1024 * 1024)))

    out = pl.pallas_call(
        _semantic_decoder_kernel,
        out_shape=jax.ShapeDtypeStruct((nr_pad, pack), x1.dtype),
        grid=(steps,),
        in_specs=[
            pl.BlockSpec((tr, lane), lambda i: (i, 0)),
            pl.BlockSpec((tr, lane), lambda i: (i, 0)),
            pl.BlockSpec((2, lane, pack), lambda i: (0, 0, 0)),
            pl.BlockSpec((1, 1), lambda i: (0, 0), memory_space=pltpu.SMEM),
        ],
        out_specs=pl.BlockSpec((tr, pack), lambda i: (i, 0)),
        compiler_params=pltpu.CompilerParams(
            dimension_semantics=("parallel",),
            vmem_limit_bytes=vmem_limit,
        ),
    )(x1r, x2r, wm, b)

    if nr_pad != nr:
        out = out[:nr]
    return out.reshape(*lead_shape, 1)


if __name__ == "__main__":
    # Small shapes consistent with the module: batch=2, seq=8, hidden=32.
    B, S, H = 2, 8, 32

    key = jax.random.PRNGKey(0)
    k_x1, k_x2, k_w, k_b = jax.random.split(key, 4)

    x1 = jax.random.normal(k_x1, (B, S, H), dtype=jnp.float32)
    x2 = jax.random.normal(k_x2, (B, S, H), dtype=jnp.float32)

    # Deterministic nn.Linear(2H, 1)-style init: U(-bound, bound), bound = 1/sqrt(2H)
    bound = 1.0 / jnp.sqrt(jnp.float32(2 * H))
    weight = jax.random.uniform(k_w, (1, 2 * H), minval=-bound, maxval=bound,
                                dtype=jnp.float32)
    bias = jax.random.uniform(k_b, (1,), minval=-bound, maxval=bound,
                              dtype=jnp.float32)

    out = jax.block_until_ready(semantic_decoder(x1, x2, weight, bias))
    ref = jnp.concatenate([x1, x2], axis=-1) @ weight.T + bias
    assert out.shape == (B, S, 1)
    assert jnp.allclose(out, ref, atol=1e-5, rtol=1e-5)

    # Leading size not a multiple of 4 -> pack falls back to 1; no pad copies.
    x1b = jax.random.normal(k_x1, (3, 5, H), dtype=jnp.float32)
    x2b = jax.random.normal(k_x2, (3, 5, H), dtype=jnp.float32)
    out_b = jax.block_until_ready(semantic_decoder(x1b, x2b, weight, bias))
    ref_b = jnp.concatenate([x1b, x2b], axis=-1) @ weight.T + bias
    assert out_b.shape == (3, 5, 1)
    assert jnp.allclose(out_b, ref_b, atol=1e-5, rtol=1e-5)

    # Packed path with a ragged last tile (multi-step grid, clipped writes),
    # using a small explicit tile to exercise several grid steps.
    x1c = jax.random.normal(k_x1, (7, 300, H), dtype=jnp.float32)
    x2c = jax.random.normal(k_x2, (7, 300, H), dtype=jnp.float32)
    out_c = jax.block_until_ready(semantic_decoder(x1c, x2c, weight, bias,
                                                   tile_rows=128))
    ref_c = jnp.concatenate([x1c, x2c], axis=-1) @ weight.T + bias
    assert out_c.shape == (7, 300, 1)
    assert jnp.allclose(out_c, ref_c, atol=1e-5, rtol=1e-5)

    print("KERNEL_OK")
</pallas_src>

<mosaic_0001>
module attributes {stable_mosaic.version = 11 : i64} {
  func.func @_semantic_decoder_kernel(%arg0: i32, %arg1: memref<8x128xf32, #tpu.memory_space<vmem>>, %arg2: memref<8x128xf32, #tpu.memory_space<vmem>>, %arg3: memref<2x128x4xf32, #tpu.memory_space<vmem>>, %arg4: memref<1x1xf32, #tpu.memory_space<smem>>, %arg5: memref<8x4xf32, #tpu.memory_space<vmem>>) attributes {dimension_semantics = [#tpu.dimension_semantics<parallel>], iteration_bounds = array<i64: 1>, scalar_prefetch = 0 : i64, scratch_operands = 0 : i64, tpu.core_type = #tpu.core_type<tc>, window_params = [{transform_indices = @transform_0, window_bounds = array<i64: 8, 128>}, {transform_indices = @transform_1, window_bounds = array<i64: 8, 128>}, {pipeline_mode = #tpu.pipeline_mode<synchronous>, transform_indices = @transform_2, window_bounds = array<i64: 2, 128, 4>}, {transform_indices = @transform_3, window_bounds = array<i64: 1, 1>}, {transform_indices = @transform_4, window_bounds = array<i64: 8, 4>}]} {
    %c0 = arith.constant 0 : index
    %c0_0 = arith.constant 0 : index
    %0 = vector.load %arg1[%c0, %c0_0] : memref<8x128xf32, #tpu.memory_space<vmem>>, vector<8x128xf32>
    %c0_1 = arith.constant 0 : index
    %c0_2 = arith.constant 0 : index
    %c0_3 = arith.constant 0 : index
    %1 = vector.load %arg3[%c0_1, %c0_2, %c0_3] : memref<2x128x4xf32, #tpu.memory_space<vmem>>, vector<1x128x4xf32>
    %2 = vector.shape_cast %1 : vector<1x128x4xf32> to vector<128x4xf32>
    %cst = arith.constant dense<0.000000e+00> : vector<8x4xf32>
    %3 = tpu.matmul %0, %2, %cst {dimension_numbers = #tpu.dot_dimension_numbers<[1], [0], [0], [1], [0, 0, 1, 1], [], []>} : vector<8x128xf32>, vector<128x4xf32>, vector<8x4xf32> -> vector<8x4xf32>
    %c0_4 = arith.constant 0 : index
    %c0_5 = arith.constant 0 : index
    %4 = vector.load %arg2[%c0_4, %c0_5] : memref<8x128xf32, #tpu.memory_space<vmem>>, vector<8x128xf32>
    %c1 = arith.constant 1 : index
    %c0_6 = arith.constant 0 : index
    %c0_7 = arith.constant 0 : index
    %5 = vector.load %arg3[%c1, %c0_6, %c0_7] : memref<2x128x4xf32, #tpu.memory_space<vmem>>, vector<1x128x4xf32>
    %6 = vector.shape_cast %5 : vector<1x128x4xf32> to vector<128x4xf32>
    %cst_8 = arith.constant dense<0.000000e+00> : vector<8x4xf32>
    %7 = tpu.matmul %4, %6, %cst_8 {dimension_numbers = #tpu.dot_dimension_numbers<[1], [0], [0], [1], [0, 0, 1, 1], [], []>} : vector<8x128xf32>, vector<128x4xf32>, vector<8x4xf32> -> vector<8x4xf32>
    %8 = arith.addf %3, %7 : vector<8x4xf32>
    %c0_9 = arith.constant 0 : index
    %c0_10 = arith.constant 0 : index
    %9 = memref.load %arg4[%c0_9, %c0_10] : memref<1x1xf32, #tpu.memory_space<smem>>
    %10 = vector.broadcast %9 : f32 to vector<8x4xf32>
    %11 = arith.addf %8, %10 : vector<8x4xf32>
    %c0_11 = arith.constant 0 : index
    %c0_12 = arith.constant 0 : index
    %12 = vector.load %arg5[%c0_11, %c0_12] : memref<8x4xf32, #tpu.memory_space<vmem>>, vector<8x4xf32>
    tpu.vector_store %arg5[%c0_11, %c0_12], %11 {strides = array<i32>} : memref<8x4xf32, #tpu.memory_space<vmem>>, vector<8x4xf32>,
    return
  }
  func.func @transform_0(%arg0: i32) -> (i32, i32) {
    %c0_i32 = arith.constant 0 : i32
    %c0_i32_0 = arith.constant 0 : i32
    return %arg0, %c0_i32 : i32, i32
  }
  func.func @transform_1(%arg0: i32) -> (i32, i32) {
    %c0_i32 = arith.constant 0 : i32
    %c0_i32_0 = arith.constant 0 : i32
    return %arg0, %c0_i32 : i32, i32
  }
  func.func @transform_2(%arg0: i32) -> (i32, i32, i32) {
    %c0_i32 = arith.constant 0 : i32
    %c0_i32_0 = arith.constant 0 : i32
    %c0_i32_1 = arith.constant 0 : i32
    %c0_i32_2 = arith.constant 0 : i32
    return %c0_i32, %c0_i32_0, %c0_i32_1 : i32, i32, i32
  }
  func.func @transform_3(%arg0: i32) -> (i32, i32) {
    %c0_i32 = arith.constant 0 : i32
    %c0_i32_0 = arith.constant 0 : i32
    %c0_i32_1 = arith.constant 0 : i32
    return %c0_i32, %c0_i32_0 : i32, i32
  }
  func.func @transform_4(%arg0: i32) -> (i32, i32) {
    %c0_i32 = arith.constant 0 : i32
    %c0_i32_0 = arith.constant 0 : i32
    return %arg0, %c0_i32 : i32, i32
  }
}

</mosaic_0001>

<llo_original>
// kernel: tpu_custom_call.1
$region0: #{tpu_custom_call.1}
  #allocation0 [shape = 'u32[]', space=smem, size = 0x4, offset = 0x4, fixed_abs, tag = 'smem constant byte address 0x4 - core index']
  #allocation1 [shape = 'u32[72,128]{1,0:T(1,128)}', space=vmem, size = 0x9000, scoped, tag = 'internal scratch']
  #allocation2 [shape = 'f32[1,1]{1,0:T(1,128)S(6)}', space=smem, size = 0x200, scoped, tag = 'scoped memory for tpu_custom_call.1']
  %s0 = inlined_call_operand.vmem [shape: f32[8,128], index: 0, kind: input, shape index: {}]
  %s1 = inlined_call_operand.vmem [shape: f32[8,128], index: 1, kind: input, shape index: {}]
  %s2 = inlined_call_operand.vmem [shape: f32[2,128,4], index: 2, kind: input, shape index: {}]
  %s3 = inlined_call_operand.<no memory space> [shape: f32[1,1], index: 3, kind: input, shape index: {}]
  %s4 = inlined_call_operand.vmem [shape: f32[8,4], index: 4, kind: output, shape index: {}]
  %s5 = sld [smem:[#allocation0]]
  $region26: #{tpu_custom_call.1} parent=0
    _
  %s7 = ssub.s32 1, %s5
  %s8 = scalar_select 0, %s7, %s5
  %9 = sst [smem:[#allocation2]] %s3
  // Predicated region
  $region2: #{tpu_custom_call.1} parent=0 // pred_check
    _
  $region3: #{tpu_custom_call.1} parent=0 // pred_check_branch
    %11 = sbr.rel (0) target = $region5
  $region4: #{tpu_custom_call.1} parent=0 // pred_region
    _
  $region5: #{tpu_custom_call.1} parent=0 // pred_fallthru
    _
  // Predicated region
  $region6: #{tpu_custom_call.1} parent=0 // pred_check
    _
  $region7: #{tpu_custom_call.1} parent=0 // pred_check_branch
    %13 = sbr.rel (0) target = $region9
  $region8: #{tpu_custom_call.1} parent=0 // pred_region
    _
  $region9: #{tpu_custom_call.1} parent=0 // pred_fallthru
    _
  // Predicated region
  $region10: #{tpu_custom_call.1} parent=0 // pred_check
    _
  $region11: #{tpu_custom_call.1} parent=0 // pred_check_branch
    %15 = sbr.rel (0) target = $region13
  $region12: #{tpu_custom_call.1} parent=0 // pred_region
    _
  $region13: #{tpu_custom_call.1} parent=0 // pred_fallthru
    _
  // Predicated region
  $region14: #{tpu_custom_call.1} parent=0 // pred_check
    _
  $region15: #{tpu_custom_call.1} parent=0 // pred_check_branch
    %17 = sbr.rel (0) target = $region17
  $region16: #{tpu_custom_call.1} parent=0 // pred_region
    _
  $region17: #{tpu_custom_call.1} parent=0 // pred_fallthru
    _
  %v18 = vld [vmem:[%s0] sm:$0xff]
  %v19 = vld [vmem:[%s2] sm:$0xff]
  %v20 = vld [vmem:[%s2 + $0x8] sm:$0xff]
  %v21 = vld [vmem:[%s2 + $0x10] sm:$0xff]
  %v22 = vld [vmem:[%s2 + $0x18] sm:$0xff]
  %v23 = vld [vmem:[%s2 + $0x20] sm:$0xff]
  %v24 = vld [vmem:[%s2 + $0x28] sm:$0xff]
  %v25 = vld [vmem:[%s2 + $0x30] sm:$0xff]
  %v26 = vld [vmem:[%s2 + $0x38] sm:$0xff]
  %v27 = vld [vmem:[%s2 + $0x40] sm:$0xff]
  %v28 = vld [vmem:[%s2 + $0x48] sm:$0xff]
  %v29 = vld [vmem:[%s2 + $0x50] sm:$0xff]
  %v30 = vld [vmem:[%s2 + $0x58] sm:$0xff]
  %v31 = vld [vmem:[%s2 + $0x60] sm:$0xff]
  %v32 = vld [vmem:[%s2 + $0x68] sm:$0xff]
  %v33 = vld [vmem:[%s2 + $0x70] sm:$0xff]
  %v34 = vld [vmem:[%s2 + $0x78] sm:$0xff]
  %v35 = vld [vmem:[%s1] sm:$0xff]
  %s36 = scalar_lea.vmem %s2, 128
  %v37 = vld [vmem:[%s36] sm:$0xff]
  %v38 = vld [vmem:[%s36 + $0x8] sm:$0xff]
  %v39 = vld [vmem:[%s36 + $0x10] sm:$0xff]
  %v40 = vld [vmem:[%s36 + $0x18] sm:$0xff]
  %v41 = vld [vmem:[%s36 + $0x20] sm:$0xff]
  %v42 = vld [vmem:[%s36 + $0x28] sm:$0xff]
  %v43 = vld [vmem:[%s36 + $0x30] sm:$0xff]
  %v44 = vld [vmem:[%s36 + $0x38] sm:$0xff]
  %v45 = vld [vmem:[%s36 + $0x40] sm:$0xff]
  %v46 = vld [vmem:[%s36 + $0x48] sm:$0xff]
  %v47 = vld [vmem:[%s36 + $0x50] sm:$0xff]
  %v48 = vld [vmem:[%s36 + $0x58] sm:$0xff]
  %v49 = vld [vmem:[%s36 + $0x60] sm:$0xff]
  %v50 = vld [vmem:[%s36 + $0x68] sm:$0xff]
  %v51 = vld [vmem:[%s36 + $0x70] sm:$0xff]
  %v52 = vld [vmem:[%s36 + $0x78] sm:$0xff]
  %53 = vmatpush.msra.mxu0 %v52
  %54 = vmatpush.msra.mxu0 %v51
  %55 = vmatpush.msra.mxu0 %v50
  %56 = vmatpush.msra.mxu0 %v49
  %57 = vmatpush.msra.mxu0 %v48
  %58 = vmatpush.msra.mxu0 %v47
  %59 = vmatpush.msra.mxu0 %v46
  %60 = vmatpush.msra.mxu0 %v45
  %61 = vmatpush.msra.mxu0 %v44
  %62 = vmatpush.msra.mxu0 %v43
  %63 = vmatpush.msra.mxu0 %v42
  %64 = vmatpush.msra.mxu0 %v41
  %65 = vmatpush.msra.mxu0 %v40
  %66 = vmatpush.msra.mxu0 %v39
  %67 = vmatpush.msra.mxu0 %v38
  %68 = vmatpush.msra.mxu0 %v37
  %69 = vmatmul.f32.gmra.mxu0 %v35
  %v70 = vpop.f32.mrf.mxu0
  %v71 = vadd.f32 0.0, %v70
  %72 = vdwg.mxu0
  %73 = vmatpush.msra.mxu0 %v34
  %74 = vmatpush.msra.mxu0 %v33
  %75 = vmatpush.msra.mxu0 %v32
  %76 = vmatpush.msra.mxu0 %v31
  %77 = vmatpush.msra.mxu0 %v30
  %78 = vmatpush.msra.mxu0 %v29
  %79 = vmatpush.msra.mxu0 %v28
  %80 = vmatpush.msra.mxu0 %v27
  %81 = vmatpush.msra.mxu0 %v26
  %82 = vmatpush.msra.mxu0 %v25
  %83 = vmatpush.msra.mxu0 %v24
  %84 = vmatpush.msra.mxu0 %v23
  %85 = vmatpush.msra.mxu0 %v22
  %86 = vmatpush.msra.mxu0 %v21
  %87 = vmatpush.msra.mxu0 %v20
  %88 = vmatpush.msra.mxu0 %v19
  %89 = vmatmul.f32.gmra.mxu0 %v18
  %v90 = vpop.f32.mrf.mxu0
  %v91 = vadd.f32 %v71, %v90
  %92 = vdwg.mxu0
  %s93 = sld [smem:[#allocation2]]
  %v94 = vstv %s93
  %v95 = vadd.f32 %v91, %v94
  %vm96 = vcmask 31744
  %97 = vst.msk [vmem:[%s4] sm:$0xff] %vm96, %v95
  // Predicated region
  $region18: #{tpu_custom_call.1} parent=0 // pred_check
    _
  $region19: #{tpu_custom_call.1} parent=0 // pred_check_branch
    %99 = sbr.rel (0) target = $region21
  $region20: #{tpu_custom_call.1} parent=0 // pred_region
    _
  $region21: #{tpu_custom_call.1} parent=0 // pred_fallthru
    _
  // Predicated region
  $region22: #{tpu_custom_call.1} parent=0 // pred_check
    _
  $region23: #{tpu_custom_call.1} parent=0 // pred_check_branch
    %101 = sbr.rel (0) target = $region25
  $region24: #{tpu_custom_call.1} parent=0 // pred_region
    _
  $region25: #{tpu_custom_call.1} parent=0 // pred_fallthru
    _

</llo_original>
